<compile_context>
chip_gen: v7x
topology: tpu7x:2x2x1
jax: 0.10.0
libtpu: 0.0.40
codegen_flags: <defaults>
</compile_context>

<pallas_src>
import functools

import jax
import jax.numpy as jnp
from jax.experimental import pallas as pl
from jax.experimental.pallas import tpu as pltpu


def _round_up(x: int, m: int) -> int:
    return (x + m - 1) // m * m


# ---------------------------------------------------------------------------
# Kernel bodies
# ---------------------------------------------------------------------------
def _ldam_fused_gate_kernel(d_pad, xy_ref, wg_ref, bg_ref, wc_ref, bc_ref,
                            out_ref, h_ref):
    """Gate projections fused into one MXU matmul (small embed/out dims).

    xy = [x | y], wg = [[wx, wx], [wy, -wy]], bg = [bx+by | bx-by]
    xy @ wg + bg = [u+v | u-v] = [s | t];  g = sigmoid(s);  h = (s-t)/2 + g*t
    """
    @pl.when(pl.program_id(1) == 0)           # gate computed once per batch tile
    def _():
        st = jnp.dot(xy_ref[...], wg_ref[...],
                     preferred_element_type=jnp.float32) + bg_ref[...]
        s = st[:, :d_pad]                      # u + v   (128-aligned slice)
        t = st[:, d_pad:]                      # u - v
        g = jax.nn.sigmoid(s)                  # EUP transcendental (f32)
        h_ref[...] = 0.5 * (s - t) + g * t     # == v + g*(u-v) == g*u + (1-g)*v

    logits = jnp.dot(h_ref[...].astype(wc_ref.dtype), wc_ref[...],
                     preferred_element_type=jnp.float32) + bc_ref[...]
    out_ref[...] = logits.astype(out_ref.dtype)


def _ldam_sep_gate_kernel(x_ref, y_ref, wx_ref, bx_ref, wy_ref, by_ref,
                          wc_ref, bc_ref, out_ref, h_ref):
    """Two separate gate projections (used when padded embed/out dims > 128)."""
    @pl.when(pl.program_id(1) == 0)
    def _():
        u = jnp.dot(x_ref[...], wx_ref[...],
                    preferred_element_type=jnp.float32) + bx_ref[...]
        v = jnp.dot(y_ref[...], wy_ref[...],
                    preferred_element_type=jnp.float32) + by_ref[...]
        g = jax.nn.sigmoid(u + v)
        h_ref[...] = v + g * (u - v)           # == g*u + (1-g)*v

    logits = jnp.dot(h_ref[...].astype(wc_ref.dtype), wc_ref[...],
                     preferred_element_type=jnp.float32) + bc_ref[...]
    out_ref[...] = logits.astype(out_ref.dtype)


# ---------------------------------------------------------------------------
# Wrapper
# ---------------------------------------------------------------------------
def ldam_classifier(x, y, params, *, tile_n=1024, tile_c=None,
                    matmul_dtype=None, out_dtype=None):
    """Fused LDAMClassifier forward.  x, y: (N, embed_dim) -> logits (N, class_num).

    matmul_dtype=jnp.bfloat16 halves activation/weight HBM traffic and uses the
    bf16-native MXU path (recommended on v5e/v6e/v7x); gate math and matmul
    accumulation remain float32.  When matmul_dtype=bf16 the logits default to
    bf16 as well (halved writeback of the memory-bound (N, class) output);
    pass out_dtype=jnp.float32 to override.
    """
    wx, bx, wy, by, wc, bc = params
    assert x.shape == y.shape, "x and y must share the same (N, embed_dim) shape"
    n, e = x.shape
    d = wx.shape[1]
    c = wc.shape[1]

    mm_dtype = jnp.dtype(matmul_dtype) if matmul_dtype is not None else jnp.dtype(jnp.float32)
    if out_dtype is None:
        out_dtype = matmul_dtype if matmul_dtype is not None else jnp.float32
    out_dtype = jnp.dtype(out_dtype)

    # dtype handling: matmul inputs in mm_dtype, biases stay f32 (added to the
    # f32 accumulators).
    x = x.astype(mm_dtype)
    y = y.astype(mm_dtype)
    wx = wx.astype(mm_dtype)
    wy = wy.astype(mm_dtype)
    wc = wc.astype(mm_dtype)
    bx = bx.astype(jnp.float32)
    by = by.astype(jnp.float32)
    bc = bc.astype(jnp.float32)

    # ---- lane-dense padding of every contraction/output dim to 128 ----------
    e_pad = _round_up(e, 128)
    d_pad = _round_up(d, 128)
    c128 = _round_up(c, 128)
    if e_pad != e:
        x = jnp.pad(x, ((0, 0), (0, e_pad - e)))
        y = jnp.pad(y, ((0, 0), (0, e_pad - e)))
        wx = jnp.pad(wx, ((0, e_pad - e), (0, 0)))
        wy = jnp.pad(wy, ((0, e_pad - e), (0, 0)))
    if d_pad != d:
        wx = jnp.pad(wx, ((0, 0), (0, d_pad - d)))
        wy = jnp.pad(wy, ((0, 0), (0, d_pad - d)))
        bx = jnp.pad(bx, ((0, 0), (0, d_pad - d)))
        by = jnp.pad(by, ((0, 0), (0, d_pad - d)))
        wc = jnp.pad(wc, ((0, d_pad - d), (0, 0)))

    # ---- generation-aware VMEM budget ---------------------------------------
    try:
        cap = int(pltpu.get_tpu_info().vmem_capacity_bytes)  # per-TC VMEM
    except Exception:
        cap = 64 << 20                      # conservative fallback (v7x per-TC)
    budget = max(24 << 20, min(int(cap * 0.85), cap - (8 << 20)))

    mm_b = mm_dtype.itemsize
    out_b = out_dtype.itemsize

    fuse_gate = (e_pad <= 128) and (d_pad <= 128)
    if fuse_gate:
        gate_w_bytes = (2 * e_pad) * (2 * d_pad) * mm_b + (2 * d_pad) * 4
    else:
        gate_w_bytes = 2 * (e_pad * d_pad * mm_b + d_pad * 4)
    wc_res_bytes = d_pad * c128 * mm_b + c128 * 4

    # ---- class tiling decision (budget assumes worst-case 2x weight buffers) -
    if tile_c is not None:
        tc = min(_round_up(int(tile_c), 128), c128)
    elif 2 * (gate_w_bytes + wc_res_bytes) <= budget // 2:
        tc = c128                           # wc stays fully resident in VMEM
    else:
        tc = (budget // 4) // max(1, 2 * (d_pad * mm_b + 4))
        tc = max(128, (tc // 128) * 128)
        tc = min(tc, c128)
    c_full = _round_up(c128, tc)
    wc_resident = (tc == c_full)
    wc = jnp.pad(wc, ((0, 0), (0, c_full - wc.shape[1])))
    bc = jnp.pad(bc, ((0, 0), (0, c_full - bc.shape[1])))

    # ---- batch tile from the true VMEM footprint ----------------------------
    if wc_resident:
        wc_fp = 2 * (d_pad * c_full * mm_b + c_full * 4)
    else:
        wc_fp = 2 * (d_pad * tc * mm_b + tc * 4)       # double-buffered class tiles
    fixed_bytes = 2 * gate_w_bytes + wc_fp + (2 << 20)  # + compiler scratch margin
    row_bytes = (2 * (2 * e_pad * mm_b)      # x & y (or [x|y]) tiles, double-buffered
                 + 2 * tc * out_b            # output tile, double-buffered
                 + d_pad * 4                 # h scratch (f32)
                 + 6 * d_pad * 4             # live f32 gate intermediates
                 + tc * 4)                   # f32 logits before cast

    tn_budget = max(8, (budget - fixed_bytes) // row_bytes)
    tn = min(int(tile_n), _round_up(n, 8), int(tn_budget))
    if n >= 16:
        # >= 2 batch grid steps so the "parallel" axis can use both v7x cores.
        tn = min(tn, _round_up((n + 1) // 2, 8))
    tn = max(8, (tn // 8) * 8)
    n_pad = _round_up(n, tn)
    if n_pad != n:
        x = jnp.pad(x, ((0, n_pad - n), (0, 0)))
        y = jnp.pad(y, ((0, n_pad - n), (0, 0)))

    vmem_limit = int(min(budget, max(16 << 20, fixed_bytes + tn * row_bytes + (4 << 20))))

    # ---- operands / kernel selection ----------------------------------------
    if fuse_gate:
        xy = jnp.concatenate([x, y], axis=-1)                       # (n_pad, 2*e_pad)
        wg = jnp.concatenate(
            [jnp.concatenate([wx, wx], axis=1),
             jnp.concatenate([wy, -wy], axis=1)], axis=0)           # (2e_pad, 2d_pad)
        bg = jnp.concatenate([bx + by, bx - by], axis=1)            # (1, 2*d_pad)
        kernel = functools.partial(_ldam_fused_gate_kernel, d_pad)
        operands = (xy, wg, bg, wc, bc)
        act_specs = [pl.BlockSpec((tn, 2 * e_pad), lambda i, j: (i, 0))]
        gate_weights = (wg, bg)
    else:
        kernel = _ldam_sep_gate_kernel
        operands = (x, y, wx, bx, wy, by, wc, bc)
        act_specs = [pl.BlockSpec((tn, e_pad), lambda i, j: (i, 0)),
                     pl.BlockSpec((tn, e_pad), lambda i, j: (i, 0))]
        gate_weights = (wx, bx, wy, by)

    def _const_spec(arr, single_buffer):
        # Constant index_map -> DMA'd once; single-buffer it to halve its VMEM.
        if single_buffer:
            return pl.BlockSpec(arr.shape, lambda i, j: (0, 0),
                                pipeline_mode=pl.Buffered(1))
        return pl.BlockSpec(arr.shape, lambda i, j: (0, 0))

    def _build_in_specs(single_buffer):
        specs = list(act_specs)
        for arr in gate_weights:
            specs.append(_const_spec(arr, single_buffer))
        if wc_resident:
            specs.append(_const_spec(wc, single_buffer))
            specs.append(_const_spec(bc, single_buffer))
        else:
            specs.append(pl.BlockSpec((d_pad, tc), lambda i, j: (0, j)))
            specs.append(pl.BlockSpec((1, tc), lambda i, j: (0, j)))
        return specs

    flops = 2 * n_pad * (2 * e_pad * d_pad + d_pad * c_full)
    cost = pl.CostEstimate(
        flops=int(flops),
        transcendentals=int(n_pad * d_pad),
        bytes_accessed=int(2 * n_pad * e_pad * mm_b + gate_w_bytes
                           + d_pad * c_full * mm_b + c_full * 4
                           + n_pad * c_full * out_b))

    def _run(single_buffer):
        return pl.pallas_call(
            kernel,
            out_shape=jax.ShapeDtypeStruct((n_pad, c_full), out_dtype),
            grid=(n_pad // tn, c_full // tc),        # class axis innermost
            in_specs=_build_in_specs(single_buffer),
            out_specs=pl.BlockSpec((tn, tc), lambda i, j: (i, j)),
            scratch_shapes=[pltpu.VMEM((tn, d_pad), jnp.float32)],   # gate output h
            compiler_params=pltpu.CompilerParams(
                dimension_semantics=("parallel", "arbitrary"),
                vmem_limit_bytes=vmem_limit),
            cost_estimate=cost,
        )(*operands)

    try:
        out = _run(True)
    except Exception:
        # pipeline_mode=pl.Buffered(1) not supported on this jax/backend combo;
        # fall back to default double-buffered resident weights.
        out = _run(False)

    return out[:n, :c]


# ---------------------------------------------------------------------------
# Params / reference
# ---------------------------------------------------------------------------
def init_params(key, embed_dim, out_dim, class_num):
    """nn.Linear-style init: U(-1/sqrt(fan_in), 1/sqrt(fan_in)); weights already
    transposed to (in_features, out_features)."""
    ks = jax.random.split(key, 6)

    def linear(kw, kb, fan_in, fan_out):
        bound = 1.0 / jnp.sqrt(fan_in)
        w = jax.random.uniform(kw, (fan_in, fan_out), jnp.float32, -bound, bound)
        b = jax.random.uniform(kb, (1, fan_out), jnp.float32, -bound, bound)
        return w, b

    wx, bx = linear(ks[0], ks[1], embed_dim, out_dim)   # gate.fc_x
    wy, by = linear(ks[2], ks[3], embed_dim, out_dim)   # gate.fc_y
    wc, bc = linear(ks[4], ks[5], out_dim, class_num)   # classifier
    return wx, bx, wy, by, wc, bc


def reference_forward(x, y, params):
    wx, bx, wy, by, wc, bc = params
    u = x @ wx + bx
    v = y @ wy + by
    g = jax.nn.sigmoid(u + v)
    h = g * u + (1.0 - g) * v
    return h @ wc + bc


if __name__ == "__main__":
    key = jax.random.PRNGKey(0)

    # Case 1: small dims -> fused-gate kernel, resident classifier weights.
    embed_dim, out_dim, class_num, batch = 32, 32, 8, 8
    kx, ky, kp = jax.random.split(key, 3)
    x = jax.random.normal(kx, (batch, embed_dim), jnp.float32)
    y = jax.random.normal(ky, (batch, embed_dim), jnp.float32)
    params = init_params(kp, embed_dim, out_dim, class_num)
    out = jax.block_until_ready(ldam_classifier(x, y, params))
    ref = reference_forward(x, y, params)
    assert out.shape == (batch, class_num)
    assert jnp.allclose(out, ref, atol=1e-4, rtol=1e-4), "case1 mismatch"

    # Case 2: ragged batch, multi batch tiles AND forced class tiling
    # (exercises the @pl.when(j==0) gate-scratch reuse path).
    batch2, class_num2 = 36, 300
    params2 = init_params(jax.random.PRNGKey(3), embed_dim, out_dim, class_num2)
    x2 = jax.random.normal(jax.random.PRNGKey(1), (batch2, embed_dim), jnp.float32)
    y2 = jax.random.normal(jax.random.PRNGKey(2), (batch2, embed_dim), jnp.float32)
    out2 = jax.block_until_ready(
        ldam_classifier(x2, y2, params2, tile_n=16, tile_c=128))
    ref2 = reference_forward(x2, y2, params2)
    assert out2.shape == (batch2, class_num2)
    assert jnp.allclose(out2, ref2, atol=1e-4, rtol=1e-4), "case2 mismatch"

    # Case 3: larger embed/out dims -> separate-gate kernel path.
    embed3, outd3, cls3, batch3 = 160, 192, 10, 16
    params3 = init_params(jax.random.PRNGKey(4), embed3, outd3, cls3)
    x3 = jax.random.normal(jax.random.PRNGKey(5), (batch3, embed3), jnp.float32)
    y3 = jax.random.normal(jax.random.PRNGKey(6), (batch3, embed3), jnp.float32)
    out3 = jax.block_until_ready(ldam_classifier(x3, y3, params3))
    ref3 = reference_forward(x3, y3, params3)
    assert out3.shape == (batch3, cls3)
    assert jnp.allclose(out3, ref3, atol=1e-4, rtol=1e-4), "case3 mismatch"

    # Case 4: bf16 matmul inputs + bf16 logits (looser tolerance).
    out_bf = jax.block_until_ready(
        ldam_classifier(x, y, params, matmul_dtype=jnp.bfloat16))
    assert out_bf.shape == (batch, class_num)
    assert out_bf.dtype == jnp.bfloat16
    assert jnp.allclose(out_bf.astype(jnp.float32), ref, atol=0.2, rtol=0.2), \
        "bf16-path mismatch"

    print("KERNEL_OK")
</pallas_src>

<mosaic_0001>
module attributes {stable_mosaic.version = 11 : i64} {
  func.func @_ldam_fused_gate_kernel(%arg0: i32, %arg1: i32, %arg2: memref<8x256xf32, #tpu.memory_space<vmem>>, %arg3: memref<256x256xf32, #tpu.memory_space<vmem>>, %arg4: memref<1x256xf32, #tpu.memory_space<vmem>>, %arg5: memref<128x128xf32, #tpu.memory_space<vmem>>, %arg6: memref<1x128xf32, #tpu.memory_space<vmem>>, %arg7: memref<8x128xf32, #tpu.memory_space<vmem>>, %arg8: memref<8x128xf32, #tpu.memory_space<vmem>>) attributes {dimension_semantics = [#tpu.dimension_semantics<parallel>, #tpu.dimension_semantics<arbitrary>], iteration_bounds = array<i64: 1, 1>, scalar_prefetch = 0 : i64, scratch_operands = 1 : i64, tpu.core_type = #tpu.core_type<tc>, window_params = [{transform_indices = @transform_0, window_bounds = array<i64: 8, 256>}, {pipeline_mode = #tpu.pipeline_mode<synchronous>, transform_indices = @transform_1, window_bounds = array<i64: 256, 256>}, {pipeline_mode = #tpu.pipeline_mode<synchronous>, transform_indices = @transform_2, window_bounds = array<i64: 1, 256>}, {pipeline_mode = #tpu.pipeline_mode<synchronous>, transform_indices = @transform_3, window_bounds = array<i64: 128, 128>}, {pipeline_mode = #tpu.pipeline_mode<synchronous>, transform_indices = @transform_4, window_bounds = array<i64: 1, 128>}, {transform_indices = @transform_5, window_bounds = array<i64: 8, 128>}]} {
    %c0_i32 = arith.constant 0 : i32
    %0 = arith.cmpi eq, %arg1, %c0_i32 : i32
    %1 = arith.extui %0 : i1 to i32
    %c0_i32_0 = arith.constant 0 : i32
    %2 = arith.cmpi ne, %1, %c0_i32_0 : i32
    scf.if %2 {
      %c0_8 = arith.constant 0 : index
      %c0_9 = arith.constant 0 : index
      %10 = vector.load %arg2[%c0_8, %c0_9] : memref<8x256xf32, #tpu.memory_space<vmem>>, vector<8x256xf32>
      %c0_10 = arith.constant 0 : index
      %c0_11 = arith.constant 0 : index
      %11 = vector.load %arg3[%c0_10, %c0_11] : memref<256x256xf32, #tpu.memory_space<vmem>>, vector<256x256xf32>
      %cst_12 = arith.constant dense<0.000000e+00> : vector<8x256xf32>
      %12 = tpu.matmul %10, %11, %cst_12 {dimension_numbers = #tpu.dot_dimension_numbers<[1], [0], [0], [1], [0, 0, 1, 1], [], []>} : vector<8x256xf32>, vector<256x256xf32>, vector<8x256xf32> -> vector<8x256xf32>
      %c0_13 = arith.constant 0 : index
      %c0_14 = arith.constant 0 : index
      %13 = vector.load %arg4[%c0_13, %c0_14] : memref<1x256xf32, #tpu.memory_space<vmem>>, vector<1x256xf32>
      %14 = vector.broadcast %13 : vector<1x256xf32> to vector<8x256xf32>
      %15 = arith.addf %12, %14 : vector<8x256xf32>
      %16 = vector.extract_strided_slice %15 {offsets = [0, 0], sizes = [8, 128], strides = [1, 1]} : vector<8x256xf32> to vector<8x128xf32>
      %17 = vector.extract_strided_slice %15 {offsets = [0, 128], sizes = [8, 128], strides = [1, 1]} : vector<8x256xf32> to vector<8x128xf32>
      %18 = arith.negf %16 : vector<8x128xf32>
      %19 = math.exp %18 : vector<8x128xf32>
      %cst_15 = arith.constant 1.000000e+00 : f32
      %20 = vector.broadcast %cst_15 : f32 to vector<8x128xf32>
      %21 = arith.addf %20, %19 : vector<8x128xf32>
      %22 = arith.divf %20, %21 : vector<8x128xf32>
      %23 = arith.subf %16, %17 : vector<8x128xf32>
      %cst_16 = arith.constant 5.000000e-01 : f32
      %24 = vector.broadcast %cst_16 : f32 to vector<8x128xf32>
      %25 = arith.mulf %24, %23 : vector<8x128xf32>
      %26 = arith.mulf %22, %17 : vector<8x128xf32>
      %27 = arith.addf %25, %26 : vector<8x128xf32>
      %c0_17 = arith.constant 0 : index
      %c0_18 = arith.constant 0 : index
      %28 = vector.load %arg8[%c0_17, %c0_18] : memref<8x128xf32, #tpu.memory_space<vmem>>, vector<8x128xf32>
      tpu.vector_store %arg8[%c0_17, %c0_18], %27 {strides = array<i32>} : memref<8x128xf32, #tpu.memory_space<vmem>>, vector<8x128xf32>,
    } else {
    }
    %c0 = arith.constant 0 : index
    %c0_1 = arith.constant 0 : index
    %3 = vector.load %arg8[%c0, %c0_1] : memref<8x128xf32, #tpu.memory_space<vmem>>, vector<8x128xf32>
    %c0_2 = arith.constant 0 : index
    %c0_3 = arith.constant 0 : index
    %4 = vector.load %arg5[%c0_2, %c0_3] : memref<128x128xf32, #tpu.memory_space<vmem>>, vector<128x128xf32>
    %cst = arith.constant dense<0.000000e+00> : vector<8x128xf32>
    %5 = tpu.matmul %3, %4, %cst {dimension_numbers = #tpu.dot_dimension_numbers<[1], [0], [0], [1], [0, 0, 1, 1], [], []>} : vector<8x128xf32>, vector<128x128xf32>, vector<8x128xf32> -> vector<8x128xf32>
    %c0_4 = arith.constant 0 : index
    %c0_5 = arith.constant 0 : index
    %6 = vector.load %arg6[%c0_4, %c0_5] : memref<1x128xf32, #tpu.memory_space<vmem>>, vector<1x128xf32>
    %7 = vector.broadcast %6 : vector<1x128xf32> to vector<8x128xf32>
    %8 = arith.addf %5, %7 : vector<8x128xf32>
    %c0_6 = arith.constant 0 : index
    %c0_7 = arith.constant 0 : index
    %9 = vector.load %arg7[%c0_6, %c0_7] : memref<8x128xf32, #tpu.memory_space<vmem>>, vector<8x128xf32>
    tpu.vector_store %arg7[%c0_6, %c0_7], %8 {strides = array<i32>} : memref<8x128xf32, #tpu.memory_space<vmem>>, vector<8x128xf32>,
    return
  }
  func.func @transform_0(%arg0: i32, %arg1: i32) -> (i32, i32) {
    %c0_i32 = arith.constant 0 : i32
    %c0_i32_0 = arith.constant 0 : i32
    return %arg0, %c0_i32 : i32, i32
  }
  func.func @transform_1(%arg0: i32, %arg1: i32) -> (i32, i32) {
    %c0_i32 = arith.constant 0 : i32
    %c0_i32_0 = arith.constant 0 : i32
    %c0_i32_1 = arith.constant 0 : i32
    return %c0_i32, %c0_i32_0 : i32, i32
  }
  func.func @transform_2(%arg0: i32, %arg1: i32) -> (i32, i32) {
    %c0_i32 = arith.constant 0 : i32
    %c0_i32_0 = arith.constant 0 : i32
    %c0_i32_1 = arith.constant 0 : i32
    return %c0_i32, %c0_i32_0 : i32, i32
  }
  func.func @transform_3(%arg0: i32, %arg1: i32) -> (i32, i32) {
    %c0_i32 = arith.constant 0 : i32
    %c0_i32_0 = arith.constant 0 : i32
    %c0_i32_1 = arith.constant 0 : i32
    return %c0_i32, %c0_i32_0 : i32, i32
  }
  func.func @transform_4(%arg0: i32, %arg1: i32) -> (i32, i32) {
    %c0_i32 = arith.constant 0 : i32
    %c0_i32_0 = arith.constant 0 : i32
    %c0_i32_1 = arith.constant 0 : i32
    return %c0_i32, %c0_i32_0 : i32, i32
  }
  func.func @transform_5(%arg0: i32, %arg1: i32) -> (i32, i32) {
    %c0_i32 = arith.constant 0 : i32
    return %arg0, %arg1 : i32, i32
  }
}

module attributes {stable_mosaic.version = 11 : i64} {
  func.func @_ldam_fused_gate_kernel(%arg0: i32, %arg1: i32, %arg2: memref<8x256xf32, #tpu.memory_space<vmem>>, %arg3: memref<256x256xf32, #tpu.memory_space<vmem>>, %arg4: memref<1x256xf32, #tpu.memory_space<vmem>>, %arg5: memref<128x128xf32, #tpu.memory_space<vmem>>, %arg6: memref<1x128xf32, #tpu.memory_space<vmem>>, %arg7: memref<8x128xf32, #tpu.memory_space<vmem>>, %arg8: memref<8x128xf32, #tpu.memory_space<vmem>>) attributes {dimension_semantics = [#tpu.dimension_semantics<parallel>, #tpu.dimension_semantics<arbitrary>], iteration_bounds = array<i64: 1, 1>, scalar_prefetch = 0 : i64, scratch_operands = 1 : i64, tpu.core_type = #tpu.core_type<tc>, window_params = [{transform_indices = @transform_0, window_bounds = array<i64: 8, 256>}, {pipeline_mode = #tpu.pipeline_mode<synchronous>, transform_indices = @transform_1, window_bounds = array<i64: 256, 256>}, {pipeline_mode = #tpu.pipeline_mode<synchronous>, transform_indices = @transform_2, window_bounds = array<i64: 1, 256>}, {pipeline_mode = #tpu.pipeline_mode<synchronous>, transform_indices = @transform_3, window_bounds = array<i64: 128, 128>}, {pipeline_mode = #tpu.pipeline_mode<synchronous>, transform_indices = @transform_4, window_bounds = array<i64: 1, 128>}, {transform_indices = @transform_5, window_bounds = array<i64: 8, 128>}]} {
    %c0_i32 = arith.constant 0 : i32
    %0 = arith.cmpi eq, %arg1, %c0_i32 : i32
    %1 = arith.extui %0 : i1 to i32
    %c0_i32_0 = arith.constant 0 : i32
    %2 = arith.cmpi ne, %1, %c0_i32_0 : i32
    scf.if %2 {
      %c0_8 = arith.constant 0 : index
      %c0_9 = arith.constant 0 : index
      %10 = vector.load %arg2[%c0_8, %c0_9] : memref<8x256xf32, #tpu.memory_space<vmem>>, vector<8x256xf32>
      %c0_10 = arith.constant 0 : index
      %c0_11 = arith.constant 0 : index
      %11 = vector.load %arg3[%c0_10, %c0_11] : memref<256x256xf32, #tpu.memory_space<vmem>>, vector<256x256xf32>
      %cst_12 = arith.constant dense<0.000000e+00> : vector<8x256xf32>
      %12 = tpu.matmul %10, %11, %cst_12 {dimension_numbers = #tpu.dot_dimension_numbers<[1], [0], [0], [1], [0, 0, 1, 1], [], []>} : vector<8x256xf32>, vector<256x256xf32>, vector<8x256xf32> -> vector<8x256xf32>
      %c0_13 = arith.constant 0 : index
      %c0_14 = arith.constant 0 : index
      %13 = vector.load %arg4[%c0_13, %c0_14] : memref<1x256xf32, #tpu.memory_space<vmem>>, vector<1x256xf32>
      %14 = vector.broadcast %13 : vector<1x256xf32> to vector<8x256xf32>
      %15 = arith.addf %12, %14 : vector<8x256xf32>
      %16 = vector.extract_strided_slice %15 {offsets = [0, 0], sizes = [8, 128], strides = [1, 1]} : vector<8x256xf32> to vector<8x128xf32>
      %17 = vector.extract_strided_slice %15 {offsets = [0, 128], sizes = [8, 128], strides = [1, 1]} : vector<8x256xf32> to vector<8x128xf32>
      %18 = arith.negf %16 : vector<8x128xf32>
      %19 = math.exp %18 : vector<8x128xf32>
      %cst_15 = arith.constant 1.000000e+00 : f32
      %20 = vector.broadcast %cst_15 : f32 to vector<8x128xf32>
      %21 = arith.addf %20, %19 : vector<8x128xf32>
      %22 = arith.divf %20, %21 : vector<8x128xf32>
      %23 = arith.subf %16, %17 : vector<8x128xf32>
      %cst_16 = arith.constant 5.000000e-01 : f32
      %24 = vector.broadcast %cst_16 : f32 to vector<8x128xf32>
      %25 = arith.mulf %24, %23 : vector<8x128xf32>
      %26 = arith.mulf %22, %17 : vector<8x128xf32>
      %27 = arith.addf %25, %26 : vector<8x128xf32>
      %c0_17 = arith.constant 0 : index
      %c0_18 = arith.constant 0 : index
      %28 = vector.load %arg8[%c0_17, %c0_18] : memref<8x128xf32, #tpu.memory_space<vmem>>, vector<8x128xf32>
      tpu.vector_store %arg8[%c0_17, %c0_18], %27 {strides = array<i32>} : memref<8x128xf32, #tpu.memory_space<vmem>>, vector<8x128xf32>,
    } else {
    }
    %c0 = arith.constant 0 : index
    %c0_1 = arith.constant 0 : index
    %3 = vector.load %arg8[%c0, %c0_1] : memref<8x128xf32, #tpu.memory_space<vmem>>, vector<8x128xf32>
    %c0_2 = arith.constant 0 : index
    %c0_3 = arith.constant 0 : index
    %4 = vector.load %arg5[%c0_2, %c0_3] : memref<128x128xf32, #tpu.memory_space<vmem>>, vector<128x128xf32>
    %cst = arith.constant dense<0.000000e+00> : vector<8x128xf32>
    %5 = tpu.matmul %3, %4, %cst {dimension_numbers = #tpu.dot_dimension_numbers<[1], [0], [0], [1], [0, 0, 1, 1], [], []>} : vector<8x128xf32>, vector<128x128xf32>, vector<8x128xf32> -> vector<8x128xf32>
    %c0_4 = arith.constant 0 : index
    %c0_5 = arith.constant 0 : index
    %6 = vector.load %arg6[%c0_4, %c0_5] : memref<1x128xf32, #tpu.memory_space<vmem>>, vector<1x128xf32>
    %7 = vector.broadcast %6 : vector<1x128xf32> to vector<8x128xf32>
    %8 = arith.addf %5, %7 : vector<8x128xf32>
    %c0_6 = arith.constant 0 : index
    %c0_7 = arith.constant 0 : index
    %9 = vector.load %arg7[%c0_6, %c0_7] : memref<8x128xf32, #tpu.memory_space<vmem>>, vector<8x128xf32>
    tpu.vector_store %arg7[%c0_6, %c0_7], %8 {strides = array<i32>} : memref<8x128xf32, #tpu.memory_space<vmem>>, vector<8x128xf32>,
    return
  }
  func.func @transform_0(%arg0: i32, %arg1: i32) -> (i32, i32) {
    %c0_i32 = arith.constant 0 : i32
    %c0_i32_0 = arith.constant 0 : i32
    return %arg0, %c0_i32 : i32, i32
  }
  func.func @transform_1(%arg0: i32, %arg1: i32) -> (i32, i32) {
    %c0_i32 = arith.constant 0 : i32
    %c0_i32_0 = arith.constant 0 : i32
    %c0_i32_1 = arith.constant 0 : i32
    return %c0_i32, %c0_i32_0 : i32, i32
  }
  func.func @transform_2(%arg0: i32, %arg1: i32) -> (i32, i32) {
    %c0_i32 = arith.constant 0 : i32
    %c0_i32_0 = arith.constant 0 : i32
    %c0_i32_1 = arith.constant 0 : i32
    return %c0_i32, %c0_i32_0 : i32, i32
  }
  func.func @transform_3(%arg0: i32, %arg1: i32) -> (i32, i32) {
    %c0_i32 = arith.constant 0 : i32
    %c0_i32_0 = arith.constant 0 : i32
    %c0_i32_1 = arith.constant 0 : i32
    return %c0_i32, %c0_i32_0 : i32, i32
  }
  func.func @transform_4(%arg0: i32, %arg1: i32) -> (i32, i32) {
    %c0_i32 = arith.constant 0 : i32
    %c0_i32_0 = arith.constant 0 : i32
    %c0_i32_1 = arith.constant 0 : i32
    return %c0_i32, %c0_i32_0 : i32, i32
  }
  func.func @transform_5(%arg0: i32, %arg1: i32) -> (i32, i32) {
    %c0_i32 = arith.constant 0 : i32
    return %arg0, %arg1 : i32, i32
  }
}

</mosaic_0001>

<llo_original>
// kernel: tpu_custom_call.1
$region0: #{tpu_custom_call.1}
  #allocation0 [shape = 'u32[]', space=smem, size = 0x4, offset = 0x4, fixed_abs, tag = 'smem constant byte address 0x4 - core index']
  #allocation1 [shape = 'u32[144,128]{1,0:T(1,128)}', space=vmem, size = 0x12000, scoped, tag = 'internal scratch']
  #allocation2 [shape = 'f32[8,128]{1,0:T(8,128)}', space=vmem, size = 0x1000, scoped, tag = 'scratch operand']
  %s0 = inlined_call_operand.hbm [shape: f32[8,256], index: 0, kind: input, shape index: {}]
  %s1 = inlined_call_operand.hbm [shape: f32[256,256], index: 1, kind: input, shape index: {}]
  %s2 = inlined_call_operand.vmem [shape: f32[1,256], index: 2, kind: input, shape index: {}]
  %s3 = inlined_call_operand.hbm [shape: f32[128,128], index: 3, kind: input, shape index: {}]
  %s4 = inlined_call_operand.vmem [shape: f32[1,128], index: 4, kind: input, shape index: {}]
  %s5 = inlined_call_operand.hbm [shape: f32[8,128], index: 5, kind: output, shape index: {}]
  %s6 = sld [smem:[#allocation0]]
  $region46: #{tpu_custom_call.1} parent=0
    _
  %s8 = ssub.s32 1, %s6
  %s9 = scalar_select 0, %s8, %s6
  $region1: #{tpu_custom_call.1} parent=0
    #allocation3 [shape = 'u8[8192]{0}', space=vmem, size = 0x2000, scoped, tag = 'input window, operand 0, single buffered']
    #allocation4 [shape = 's32[1]{0}', space=sflag, size = 0x4, scoped, tag = 'scoped memory for tpu_custom_call.1']
    #allocation5 [shape = 's32[1]{0}', space=sflag, size = 0x4, scoped, tag = 'scoped memory for tpu_custom_call.1']
    #allocation6 [shape = 'u8[262144]{0}', space=vmem, size = 0x40000, scoped, tag = 'input window, operand 1, single buffered']
    #allocation7 [shape = 's32[1]{0}', space=sflag, size = 0x4, scoped, tag = 'scoped memory for tpu_custom_call.1']
    #allocation8 [shape = 'u8[65536]{0}', space=vmem, size = 0x10000, scoped, tag = 'input window, operand 3, single buffered']
    #allocation9 [shape = 'u8[4096]{0}', space=vmem, size = 0x1000, scoped, tag = 'output window, operand 0, single buffered']
    %10 = vsyncpa [#allocation4], 0
    %11 = vsyncpa [#allocation7], 0
    %12 = vsyncpa [#allocation5], 0
    // Predicated region
    $region2: #{tpu_custom_call.1} parent=1 // pred_check
      _
    $region3: #{tpu_custom_call.1} parent=1 // pred_check_branch
      %14 = sbr.rel (0) target = $region5
    $region4: #{tpu_custom_call.1} parent=1 // pred_region
      %s16 = ssub.s32 256, 256
      %17 = vsyncadd [#allocation4], %s16
      %s19 = sshll.u32 [#allocation3], 4
      %s20 = int_to_ptr.vmem [resolvable:$true] %s19
      %22 = dma.hbm_to_vmem [thread:$0]  %s0, 256, %s20, [#allocation4]
    $region5: #{tpu_custom_call.1} parent=1 // pred_fallthru
      _
    // Predicated region
    $region6: #{tpu_custom_call.1} parent=1 // pred_check
      _
    $region7: #{tpu_custom_call.1} parent=1 // pred_check_branch
      %24 = sbr.rel (0) target = $region9
    $region8: #{tpu_custom_call.1} parent=1 // pred_region
      %s26 = ssub.s32 8192, 8192
      %27 = vsyncadd [#allocation7], %s26
      %s28 = sshll.u32 [#allocation6], 4
      %s29 = int_to_ptr.vmem [resolvable:$true] %s28
      %34 = dma.hbm_to_vmem [thread:$0]  %s1, 8192, %s29, [#allocation7], 256, 256, 16
    $region9: #{tpu_custom_call.1} parent=1 // pred_fallthru
      _
    // Predicated region
    $region10: #{tpu_custom_call.1} parent=1 // pred_check
      _
    $region11: #{tpu_custom_call.1} parent=1 // pred_check_branch
      %36 = sbr.rel (0) target = $region13
    $region12: #{tpu_custom_call.1} parent=1 // pred_region
      _
    $region13: #{tpu_custom_call.1} parent=1 // pred_fallthru
      _
    // Predicated region
    $region14: #{tpu_custom_call.1} parent=1 // pred_check
      _
    $region15: #{tpu_custom_call.1} parent=1 // pred_check_branch
      %38 = sbr.rel (0) target = $region17
    $region16: #{tpu_custom_call.1} parent=1 // pred_region
      %s40 = ssub.s32 2048, 2048
      %41 = vsyncadd [#allocation7], %s40
      %s42 = sshll.u32 [#allocation8], 4
      %s43 = int_to_ptr.vmem [resolvable:$true] %s42
      %48 = dma.hbm_to_vmem [thread:$0]  %s3, 2048, %s43, [#allocation7], 128, 128, 8
    $region17: #{tpu_custom_call.1} parent=1 // pred_fallthru
      _
    // Predicated region
    $region18: #{tpu_custom_call.1} parent=1 // pred_check
      _
    $region19: #{tpu_custom_call.1} parent=1 // pred_check_branch
      %50 = sbr.rel (0) target = $region21
    $region20: #{tpu_custom_call.1} parent=1 // pred_region
      _
    $region21: #{tpu_custom_call.1} parent=1 // pred_fallthru
      _
    // Predicated region
    $region22: #{tpu_custom_call.1} parent=1 // pred_check
      _
    $region23: #{tpu_custom_call.1} parent=1 // pred_check_branch
      %52 = sbr.rel (0) target = $region25
    $region24: #{tpu_custom_call.1} parent=1 // pred_region
      %53 = dma.done [#allocation4], 256
    $region25: #{tpu_custom_call.1} parent=1 // pred_fallthru
      _
    // Predicated region
    $region26: #{tpu_custom_call.1} parent=1 // pred_check
      _
    $region27: #{tpu_custom_call.1} parent=1 // pred_check_branch
      %55 = sbr.rel (0) target = $region29
    $region28: #{tpu_custom_call.1} parent=1 // pred_region
      %56 = dma.done [#allocation7], 8192
    $region29: #{tpu_custom_call.1} parent=1 // pred_fallthru
      _
    // Predicated region
    $region30: #{tpu_custom_call.1} parent=1 // pred_check
      _
    $region31: #{tpu_custom_call.1} parent=1 // pred_check_branch
      %58 = sbr.rel (0) target = $region33
    $region32: #{tpu_custom_call.1} parent=1 // pred_region
      %59 = dma.done [#allocation7], 2048
    $region33: #{tpu_custom_call.1} parent=1 // pred_fallthru
      _
    %p60 = scmp.eq.s32.totalorder 0, 0
    // Predicated region
    $region34: #{tpu_custom_call.1} parent=1 // pred_check
      %p61 = pneg %p60
    $region35: #{tpu_custom_call.1} parent=1 // pred_check_branch
      %63 = sbr.rel (%p61) target = $region37
    $region36: #{tpu_custom_call.1} parent=1 // pred_region
      %v64 = vld [vmem:[#allocation3] sm:$0xff]
      %v65 = vld [vmem:[#allocation3 + $0x8] sm:$0xff]
      %v66 = vld [vmem:[#allocation6] sm:$0xff]
      %v67 = vld [vmem:[#allocation6 + $0x8] sm:$0xff]
      %v68 = vld [vmem:[#allocation6 + $0x10] sm:$0xff]
      %v69 = vld [vmem:[#allocation6 + $0x18] sm:$0xff]
      %v70 = vld [vmem:[#allocation6 + $0x20] sm:$0xff]
      %v71 = vld [vmem:[#allocation6 + $0x28] sm:$0xff]
      %v72 = vld [vmem:[#allocation6 + $0x30] sm:$0xff]
      %v73 = vld [vmem:[#allocation6 + $0x38] sm:$0xff]
      %v74 = vld [vmem:[#allocation6 + $0x40] sm:$0xff]
      %v75 = vld [vmem:[#allocation6 + $0x48] sm:$0xff]
      %v76 = vld [vmem:[#allocation6 + $0x50] sm:$0xff]
      %v77 = vld [vmem:[#allocation6 + $0x58] sm:$0xff]
      %v78 = vld [vmem:[#allocation6 + $0x60] sm:$0xff]
      %v79 = vld [vmem:[#allocation6 + $0x68] sm:$0xff]
      %v80 = vld [vmem:[#allocation6 + $0x70] sm:$0xff]
      %v81 = vld [vmem:[#allocation6 + $0x78] sm:$0xff]
      %v82 = vld [vmem:[#allocation6 + $0x80] sm:$0xff]
      %v83 = vld [vmem:[#allocation6 + $0x88] sm:$0xff]
      %v84 = vld [vmem:[#allocation6 + $0x90] sm:$0xff]
      %v85 = vld [vmem:[#allocation6 + $0x98] sm:$0xff]
      %v86 = vld [vmem:[#allocation6 + $0xa0] sm:$0xff]
      %v87 = vld [vmem:[#allocation6 + $0xa8] sm:$0xff]
      %v88 = vld [vmem:[#allocation6 + $0xb0] sm:$0xff]
      %v89 = vld [vmem:[#allocation6 + $0xb8] sm:$0xff]
      %v90 = vld [vmem:[#allocation6 + $0xc0] sm:$0xff]
      %v91 = vld [vmem:[#allocation6 + $0xc8] sm:$0xff]
      %v92 = vld [vmem:[#allocation6 + $0xd0] sm:$0xff]
      %v93 = vld [vmem:[#allocation6 + $0xd8] sm:$0xff]
      %v94 = vld [vmem:[#allocation6 + $0xe0] sm:$0xff]
      %v95 = vld [vmem:[#allocation6 + $0xe8] sm:$0xff]
      %v96 = vld [vmem:[#allocation6 + $0xf0] sm:$0xff]
      %v97 = vld [vmem:[#allocation6 + $0xf8] sm:$0xff]
      %v98 = vld [vmem:[#allocation6 + $0x100] sm:$0xff]
      %v99 = vld [vmem:[#allocation6 + $0x108] sm:$0xff]
      %v100 = vld [vmem:[#allocation6 + $0x110] sm:$0xff]
      %v101 = vld [vmem:[#allocation6 + $0x118] sm:$0xff]
      %v102 = vld [vmem:[#allocation6 + $0x120] sm:$0xff]
      %v103 = vld [vmem:[#allocation6 + $0x128] sm:$0xff]
      %v104 = vld [vmem:[#allocation6 + $0x130] sm:$0xff]
      %v105 = vld [vmem:[#allocation6 + $0x138] sm:$0xff]
      %v106 = vld [vmem:[#allocation6 + $0x140] sm:$0xff]
      %v107 = vld [vmem:[#allocation6 + $0x148] sm:$0xff]
      %v108 = vld [vmem:[#allocation6 + $0x150] sm:$0xff]
      %v109 = vld [vmem:[#allocation6 + $0x158] sm:$0xff]
      %v110 = vld [vmem:[#allocation6 + $0x160] sm:$0xff]
      %v111 = vld [vmem:[#allocation6 + $0x168] sm:$0xff]
      %v112 = vld [vmem:[#allocation6 + $0x170] sm:$0xff]
      %v113 = vld [vmem:[#allocation6 + $0x178] sm:$0xff]
      %v114 = vld [vmem:[#allocation6 + $0x180] sm:$0xff]
      %v115 = vld [vmem:[#allocation6 + $0x188] sm:$0xff]
      %v116 = vld [vmem:[#allocation6 + $0x190] sm:$0xff]
      %v117 = vld [vmem:[#allocation6 + $0x198] sm:$0xff]
      %v118 = vld [vmem:[#allocation6 + $0x1a0] sm:$0xff]
      %v119 = vld [vmem:[#allocation6 + $0x1a8] sm:$0xff]
      %v120 = vld [vmem:[#allocation6 + $0x1b0] sm:$0xff]
      %v121 = vld [vmem:[#allocation6 + $0x1b8] sm:$0xff]
      %v122 = vld [vmem:[#allocation6 + $0x1c0] sm:$0xff]
      %v123 = vld [vmem:[#allocation6 + $0x1c8] sm:$0xff]
      %v124 = vld [vmem:[#allocation6 + $0x1d0] sm:$0xff]
      %v125 = vld [vmem:[#allocation6 + $0x1d8] sm:$0xff]
      %v126 = vld [vmem:[#allocation6 + $0x1e0] sm:$0xff]
      %v127 = vld [vmem:[#allocation6 + $0x1e8] sm:$0xff]
      %v128 = vld [vmem:[#allocation6 + $0x1f0] sm:$0xff]
      %v129 = vld [vmem:[#allocation6 + $0x1f8] sm:$0xff]
      %v130 = vld [vmem:[%s2] sm:$0x3]
      %v132 = vlaneseq
      %v133 = vshrl.u32 %v132, 7
      %v134 = vsub.s32 0, %v133
      %v135 = vrot.slane %v130, %v134
      %v136 = vlaneseq
      %v137 = vshrl.u32 %v136, 7
      %v138 = vsub.s32 1, %v137
      %v139 = vrot.slane %v130, %v138
      %142 = vmatprep.subr.mxu0 %v67
      %143 = vmatpush1.msra.mxu0 %v66
      %144 = vmatprep.subr.mxu0 %v69
      %145 = vmatpush1.msra.mxu0 %v68
      %146 = vmatprep.subr.mxu0 %v71
      %147 = vmatpush1.msra.mxu0 %v70
      %148 = vmatprep.subr.mxu0 %v73
      %149 = vmatpush1.msra.mxu0 %v72
      %150 = vmatprep.subr.mxu0 %v75
      %151 = vmatpush1.msra.mxu0 %v74
      %152 = vmatprep.subr.mxu0 %v77
      %153 = vmatpush1.msra.mxu0 %v76
      %154 = vmatprep.subr.mxu0 %v79
      %155 = vmatpush1.msra.mxu0 %v78
      %156 = vmatprep.subr.mxu0 %v81
      %157 = vmatpush1.msra.mxu0 %v80
      %158 = vmatprep.subr.mxu0 %v83
      %159 = vmatpush1.msra.mxu0 %v82
      %160 = vmatprep.subr.mxu0 %v85
      %161 = vmatpush1.msra.mxu0 %v84
      %162 = vmatprep.subr.mxu0 %v87
      %163 = vmatpush1.msra.mxu0 %v86
      %164 = vmatprep.subr.mxu0 %v89
      %165 = vmatpush1.msra.mxu0 %v88
      %166 = vmatprep.subr.mxu0 %v91
      %167 = vmatpush1.msra.mxu0 %v90
      %168 = vmatprep.subr.mxu0 %v93
      %169 = vmatpush1.msra.mxu0 %v92
      %170 = vmatprep.subr.mxu0 %v95
      %171 = vmatpush1.msra.mxu0 %v94
      %172 = vmatprep.subr.mxu0 %v97
      %173 = vmatpush1.msra.mxu0 %v96
      %174 = vmatprep.subr.mxu0 %v99
      %175 = vmatpush1.msra.mxu0 %v98
      %176 = vmatprep.subr.mxu0 %v101
      %177 = vmatpush1.msra.mxu0 %v100
      %178 = vmatprep.subr.mxu0 %v103
      %179 = vmatpush1.msra.mxu0 %v102
      %180 = vmatprep.subr.mxu0 %v105
      %181 = vmatpush1.msra.mxu0 %v104
      %182 = vmatprep.subr.mxu0 %v107
      %183 = vmatpush1.msra.mxu0 %v106
      %184 = vmatprep.subr.mxu0 %v109
      %185 = vmatpush1.msra.mxu0 %v108
      %186 = vmatprep.subr.mxu0 %v111
      %187 = vmatpush1.msra.mxu0 %v110
      %188 = vmatprep.subr.mxu0 %v113
      %189 = vmatpush1.msra.mxu0 %v112
      %190 = vmatprep.subr.mxu0 %v115
      %191 = vmatpush1.msra.mxu0 %v114
      %192 = vmatprep.subr.mxu0 %v117
      %193 = vmatpush1.msra.mxu0 %v116
      %194 = vmatprep.subr.mxu0 %v119
      %195 = vmatpush1.msra.mxu0 %v118
      %196 = vmatprep.subr.mxu0 %v121
      %197 = vmatpush1.msra.mxu0 %v120
      %198 = vmatprep.subr.mxu0 %v123
      %199 = vmatpush1.msra.mxu0 %v122
      %200 = vmatprep.subr.mxu0 %v125
      %201 = vmatpush1.msra.mxu0 %v124
      %202 = vmatprep.subr.mxu0 %v127
      %203 = vmatpush1.msra.mxu0 %v126
      %204 = vmatprep.subr.mxu0 %v129
      %205 = vmatpush1.msra.mxu0 %v128
      %206 = vmatprep.mubr.f32.mxu0 %v65
      %207 = vmatmul.mubr.f32.gmra.mrb[0].mxu0 %v64
      %v208 = vpop.f32.mrb[0].mxu0
      %v209 = vadd.f32 %v135, %v208
      %v210 = vpop.f32.mrb[0].mxu0
      %v211 = vadd.f32 %v139, %v210
      %212 = vdwg.mxu0
      %v213 = vxor.u32 %v209, 2147483648
      %v214 = vmul.f32 %v213, 1.442695
      %v215 = vpow.pop %v214
      %v216 = vadd.f32 %v215, 1.0
      %v217 = vrcp.pop %v216
      %v218 = vmul.f32 1.0, %v217
      %v219 = vsub.f32 %v209, %v211
      %v220 = vmul.f32 %v219, 0.5
      %v221 = vmul.f32 %v218, %v211
      %v222 = vadd.f32 %v220, %v221
      %223 = vst [vmem:[#allocation2] sm:$0xff] %v222
    $region37: #{tpu_custom_call.1} parent=1 // pred_fallthru
      _
    %v224 = vld [vmem:[#allocation2] sm:$0xff]
    %v225 = vld [vmem:[#allocation8] sm:$0xff]
    %v226 = vld [vmem:[#allocation8 + $0x8] sm:$0xff]
    %v227 = vld [vmem:[#allocation8 + $0x10] sm:$0xff]
    %v228 = vld [vmem:[#allocation8 + $0x18] sm:$0xff]
    %v229 = vld [vmem:[#allocation8 + $0x20] sm:$0xff]
    %v230 = vld [vmem:[#allocation8 + $0x28] sm:$0xff]
    %v231 = vld [vmem:[#allocation8 + $0x30] sm:$0xff]
    %v232 = vld [vmem:[#allocation8 + $0x38] sm:$0xff]
    %v233 = vld [vmem:[#allocation8 + $0x40] sm:$0xff]
    %v234 = vld [vmem:[#allocation8 + $0x48] sm:$0xff]
    %v235 = vld [vmem:[#allocation8 + $0x50] sm:$0xff]
    %v236 = vld [vmem:[#allocation8 + $0x58] sm:$0xff]
    %v237 = vld [vmem:[#allocation8 + $0x60] sm:$0xff]
    %v238 = vld [vmem:[#allocation8 + $0x68] sm:$0xff]
    %v239 = vld [vmem:[#allocation8 + $0x70] sm:$0xff]
    %v240 = vld [vmem:[#allocation8 + $0x78] sm:$0xff]
    %v241 = vld [vmem:[%s4] sm:$0x1]
    %v243 = vlaneseq
    %v244 = vshrl.u32 %v243, 7
    %v245 = vsub.s32 0, %v244
    %v246 = vrot.slane %v241, %v245
    %248 = vmatprep.subr.mxu0 0.0
    %249 = vmatpush1.msra.mxu0 %v225
    %250 = vmatprep.subr.mxu0 0.0
    %251 = vmatpush1.msra.mxu0 %v226
    %252 = vmatprep.subr.mxu0 0.0
    %253 = vmatpush1.msra.mxu0 %v227
    %254 = vmatprep.subr.mxu0 0.0
    %255 = vmatpush1.msra.mxu0 %v228
    %256 = vmatprep.subr.mxu0 0.0
    %257 = vmatpush1.msra.mxu0 %v229
    %258 = vmatprep.subr.mxu0 0.0
    %259 = vmatpush1.msra.mxu0 %v230
    %260 = vmatprep.subr.mxu0 0.0
    %261 = vmatpush1.msra.mxu0 %v231
    %262 = vmatprep.subr.mxu0 0.0
    %263 = vmatpush1.msra.mxu0 %v232
    %264 = vmatprep.subr.mxu0 0.0
    %265 = vmatpush1.msra.mxu0 %v233
    %266 = vmatprep.subr.mxu0 0.0
    %267 = vmatpush1.msra.mxu0 %v234
    %268 = vmatprep.subr.mxu0 0.0
    %269 = vmatpush1.msra.mxu0 %v235
    %270 = vmatprep.subr.mxu0 0.0
    %271 = vmatpush1.msra.mxu0 %v236
    %272 = vmatprep.subr.mxu0 0.0
    %273 = vmatpush1.msra.mxu0 %v237
    %274 = vmatprep.subr.mxu0 0.0
    %275 = vmatpush1.msra.mxu0 %v238
    %276 = vmatprep.subr.mxu0 0.0
    %277 = vmatpush1.msra.mxu0 %v239
    %278 = vmatprep.subr.mxu0 0.0
    %279 = vmatpush1.msra.mxu0 %v240
    %280 = vmatprep.subr.mxu0 0.0
    %281 = vmatpush1.msra.mxu0 0.0
    %282 = vmatprep.subr.mxu0 0.0
    %283 = vmatpush1.msra.mxu0 0.0
    %284 = vmatprep.subr.mxu0 0.0
    %285 = vmatpush1.msra.mxu0 0.0
    %286 = vmatprep.subr.mxu0 0.0
    %287 = vmatpush1.msra.mxu0 0.0
    %288 = vmatprep.subr.mxu0 0.0
    %289 = vmatpush1.msra.mxu0 0.0
    %290 = vmatprep.subr.mxu0 0.0
    %291 = vmatpush1.msra.mxu0 0.0
    %292 = vmatprep.subr.mxu0 0.0
    %293 = vmatpush1.msra.mxu0 0.0
    %294 = vmatprep.subr.mxu0 0.0
    %295 = vmatpush1.msra.mxu0 0.0
    %296 = vmatprep.subr.mxu0 0.0
    %297 = vmatpush1.msra.mxu0 0.0
    %298 = vmatprep.subr.mxu0 0.0
    %299 = vmatpush1.msra.mxu0 0.0
    %300 = vmatprep.subr.mxu0 0.0
    %301 = vmatpush1.msra.mxu0 0.0
    %302 = vmatprep.subr.mxu0 0.0
    %303 = vmatpush1.msra.mxu0 0.0
    %304 = vmatprep.subr.mxu0 0.0
    %305 = vmatpush1.msra.mxu0 0.0
    %306 = vmatprep.subr.mxu0 0.0
    %307 = vmatpush1.msra.mxu0 0.0
    %308 = vmatprep.subr.mxu0 0.0
    %309 = vmatpush1.msra.mxu0 0.0
    %310 = vmatprep.subr.mxu0 0.0
    %311 = vmatpush1.msra.mxu0 0.0
    %312 = vmatprep.mubr.f32.mxu0 0.0
    %313 = vmatmul.mubr.f32.gmra.mrb[0].mxu0 %v224
    %v314 = vpop.f32.mrb[0].mxu0
    %v315 = vadd.f32 %v246, %v314
    %v316 = vpop.f32.mrb[0].mxu0
    %317 = vdwg.mxu0
    %318 = vst [vmem:[#allocation9] sm:$0xff] %v315
    // Predicated region
    $region38: #{tpu_custom_call.1} parent=1 // pred_check
      _
    $region39: #{tpu_custom_call.1} parent=1 // pred_check_branch
      %320 = sbr.rel (0) target = $region41
    $region40: #{tpu_custom_call.1} parent=1 // pred_region
      %s322 = ssub.s32 128, 128
      %323 = vsyncadd [#allocation5], %s322
      %s325 = sshll.u32 [#allocation9], 4
      %s326 = int_to_ptr.vmem [resolvable:$true] %s325
      %328 = dma.vmem_to_hbm [thread:$0]  %s326, 128, %s5, [#allocation5]
    $region41: #{tpu_custom_call.1} parent=1 // pred_fallthru
      _
    // Predicated region
    $region42: #{tpu_custom_call.1} parent=1 // pred_check
      _
    $region43: #{tpu_custom_call.1} parent=1 // pred_check_branch
      %330 = sbr.rel (0) target = $region45
    $region44: #{tpu_custom_call.1} parent=1 // pred_region
      %331 = dma.done [#allocation5], 128
    $region45: #{tpu_custom_call.1} parent=1 // pred_fallthru
      _
    %332 = vsyncpa [#allocation4], 1
    %333 = vsyncpa [#allocation7], 1
    %334 = vsyncpa [#allocation5], 1

// kernel: tpu_custom_call.1
$region0: #{tpu_custom_call.1}
  #allocation0 [shape = 'u32[]', space=smem, size = 0x4, offset = 0x4, fixed_abs, tag = 'smem constant byte address 0x4 - core index']
  #allocation1 [shape = 'u32[144,128]{1,0:T(1,128)}', space=vmem, size = 0x12000, scoped, tag = 'internal scratch']
  #allocation2 [shape = 'f32[8,128]{1,0:T(8,128)}', space=vmem, size = 0x1000, scoped, tag = 'scratch operand']
  %s0 = inlined_call_operand.hbm [shape: f32[8,256], index: 0, kind: input, shape index: {}]
  %s1 = inlined_call_operand.hbm [shape: f32[256,256], index: 1, kind: input, shape index: {}]
  %s2 = inlined_call_operand.vmem [shape: f32[1,256], index: 2, kind: input, shape index: {}]
  %s3 = inlined_call_operand.hbm [shape: f32[128,128], index: 3, kind: input, shape index: {}]
  %s4 = inlined_call_operand.vmem [shape: f32[1,128], index: 4, kind: input, shape index: {}]
  %s5 = inlined_call_operand.hbm [shape: f32[8,128], index: 5, kind: output, shape index: {}]
  %s6 = sld [smem:[#allocation0]]
  $region46: #{tpu_custom_call.1} parent=0
    _
  %s8 = ssub.s32 1, %s6
  %s9 = scalar_select 0, %s8, %s6
  $region1: #{tpu_custom_call.1} parent=0
    #allocation3 [shape = 'u8[8192]{0}', space=vmem, size = 0x2000, scoped, tag = 'input window, operand 0, single buffered']
    #allocation4 [shape = 's32[1]{0}', space=sflag, size = 0x4, scoped, tag = 'scoped memory for tpu_custom_call.1']
    #allocation5 [shape = 's32[1]{0}', space=sflag, size = 0x4, scoped, tag = 'scoped memory for tpu_custom_call.1']
    #allocation6 [shape = 'u8[262144]{0}', space=vmem, size = 0x40000, scoped, tag = 'input window, operand 1, single buffered']
    #allocation7 [shape = 's32[1]{0}', space=sflag, size = 0x4, scoped, tag = 'scoped memory for tpu_custom_call.1']
    #allocation8 [shape = 'u8[65536]{0}', space=vmem, size = 0x10000, scoped, tag = 'input window, operand 3, single buffered']
    #allocation9 [shape = 'u8[4096]{0}', space=vmem, size = 0x1000, scoped, tag = 'output window, operand 0, single buffered']
    %10 = vsyncpa [#allocation4], 0
    %11 = vsyncpa [#allocation7], 0
    %12 = vsyncpa [#allocation5], 0
    // Predicated region
    $region2: #{tpu_custom_call.1} parent=1 // pred_check
      _
    $region3: #{tpu_custom_call.1} parent=1 // pred_check_branch
      %14 = sbr.rel (0) target = $region5
    $region4: #{tpu_custom_call.1} parent=1 // pred_region
      %s16 = ssub.s32 256, 256
      %17 = vsyncadd [#allocation4], %s16
      %s19 = sshll.u32 [#allocation3], 4
      %s20 = int_to_ptr.vmem [resolvable:$true] %s19
      %22 = dma.hbm_to_vmem [thread:$0]  %s0, 256, %s20, [#allocation4]
    $region5: #{tpu_custom_call.1} parent=1 // pred_fallthru
      _
    // Predicated region
    $region6: #{tpu_custom_call.1} parent=1 // pred_check
      _
    $region7: #{tpu_custom_call.1} parent=1 // pred_check_branch
      %24 = sbr.rel (0) target = $region9
    $region8: #{tpu_custom_call.1} parent=1 // pred_region
      %s26 = ssub.s32 8192, 8192
      %27 = vsyncadd [#allocation7], %s26
      %s28 = sshll.u32 [#allocation6], 4
      %s29 = int_to_ptr.vmem [resolvable:$true] %s28
      %34 = dma.hbm_to_vmem [thread:$0]  %s1, 8192, %s29, [#allocation7], 256, 256, 16
    $region9: #{tpu_custom_call.1} parent=1 // pred_fallthru
      _
    // Predicated region
    $region10: #{tpu_custom_call.1} parent=1 // pred_check
      _
    $region11: #{tpu_custom_call.1} parent=1 // pred_check_branch
      %36 = sbr.rel (0) target = $region13
    $region12: #{tpu_custom_call.1} parent=1 // pred_region
      _
    $region13: #{tpu_custom_call.1} parent=1 // pred_fallthru
      _
    // Predicated region
    $region14: #{tpu_custom_call.1} parent=1 // pred_check
      _
    $region15: #{tpu_custom_call.1} parent=1 // pred_check_branch
      %38 = sbr.rel (0) target = $region17
    $region16: #{tpu_custom_call.1} parent=1 // pred_region
      %s40 = ssub.s32 2048, 2048
      %41 = vsyncadd [#allocation7], %s40
      %s42 = sshll.u32 [#allocation8], 4
      %s43 = int_to_ptr.vmem [resolvable:$true] %s42
      %48 = dma.hbm_to_vmem [thread:$0]  %s3, 2048, %s43, [#allocation7], 128, 128, 8
    $region17: #{tpu_custom_call.1} parent=1 // pred_fallthru
      _
    // Predicated region
    $region18: #{tpu_custom_call.1} parent=1 // pred_check
      _
    $region19: #{tpu_custom_call.1} parent=1 // pred_check_branch
      %50 = sbr.rel (0) target = $region21
    $region20: #{tpu_custom_call.1} parent=1 // pred_region
      _
    $region21: #{tpu_custom_call.1} parent=1 // pred_fallthru
      _
    // Predicated region
    $region22: #{tpu_custom_call.1} parent=1 // pred_check
      _
    $region23: #{tpu_custom_call.1} parent=1 // pred_check_branch
      %52 = sbr.rel (0) target = $region25
    $region24: #{tpu_custom_call.1} parent=1 // pred_region
      %53 = dma.done [#allocation4], 256
    $region25: #{tpu_custom_call.1} parent=1 // pred_fallthru
      _
    // Predicated region
    $region26: #{tpu_custom_call.1} parent=1 // pred_check
      _
    $region27: #{tpu_custom_call.1} parent=1 // pred_check_branch
      %55 = sbr.rel (0) target = $region29
    $region28: #{tpu_custom_call.1} parent=1 // pred_region
      %56 = dma.done [#allocation7], 8192
    $region29: #{tpu_custom_call.1} parent=1 // pred_fallthru
      _
    // Predicated region
    $region30: #{tpu_custom_call.1} parent=1 // pred_check
      _
    $region31: #{tpu_custom_call.1} parent=1 // pred_check_branch
      %58 = sbr.rel (0) target = $region33
    $region32: #{tpu_custom_call.1} parent=1 // pred_region
      %59 = dma.done [#allocation7], 2048
    $region33: #{tpu_custom_call.1} parent=1 // pred_fallthru
      _
    %p60 = scmp.eq.s32.totalorder 0, 0
    // Predicated region
    $region34: #{tpu_custom_call.1} parent=1 // pred_check
      %p61 = pneg %p60
    $region35: #{tpu_custom_call.1} parent=1 // pred_check_branch
      %63 = sbr.rel (%p61) target = $region37
    $region36: #{tpu_custom_call.1} parent=1 // pred_region
      %v64 = vld [vmem:[#allocation3] sm:$0xff]
      %v65 = vld [vmem:[#allocation3 + $0x8] sm:$0xff]
      %v66 = vld [vmem:[#allocation6] sm:$0xff]
      %v67 = vld [vmem:[#allocation6 + $0x8] sm:$0xff]
      %v68 = vld [vmem:[#allocation6 + $0x10] sm:$0xff]
      %v69 = vld [vmem:[#allocation6 + $0x18] sm:$0xff]
      %v70 = vld [vmem:[#allocation6 + $0x20] sm:$0xff]
      %v71 = vld [vmem:[#allocation6 + $0x28] sm:$0xff]
      %v72 = vld [vmem:[#allocation6 + $0x30] sm:$0xff]
      %v73 = vld [vmem:[#allocation6 + $0x38] sm:$0xff]
      %v74 = vld [vmem:[#allocation6 + $0x40] sm:$0xff]
      %v75 = vld [vmem:[#allocation6 + $0x48] sm:$0xff]
      %v76 = vld [vmem:[#allocation6 + $0x50] sm:$0xff]
      %v77 = vld [vmem:[#allocation6 + $0x58] sm:$0xff]
      %v78 = vld [vmem:[#allocation6 + $0x60] sm:$0xff]
      %v79 = vld [vmem:[#allocation6 + $0x68] sm:$0xff]
      %v80 = vld [vmem:[#allocation6 + $0x70] sm:$0xff]
      %v81 = vld [vmem:[#allocation6 + $0x78] sm:$0xff]
      %v82 = vld [vmem:[#allocation6 + $0x80] sm:$0xff]
      %v83 = vld [vmem:[#allocation6 + $0x88] sm:$0xff]
      %v84 = vld [vmem:[#allocation6 + $0x90] sm:$0xff]
      %v85 = vld [vmem:[#allocation6 + $0x98] sm:$0xff]
      %v86 = vld [vmem:[#allocation6 + $0xa0] sm:$0xff]
      %v87 = vld [vmem:[#allocation6 + $0xa8] sm:$0xff]
      %v88 = vld [vmem:[#allocation6 + $0xb0] sm:$0xff]
      %v89 = vld [vmem:[#allocation6 + $0xb8] sm:$0xff]
      %v90 = vld [vmem:[#allocation6 + $0xc0] sm:$0xff]
      %v91 = vld [vmem:[#allocation6 + $0xc8] sm:$0xff]
      %v92 = vld [vmem:[#allocation6 + $0xd0] sm:$0xff]
      %v93 = vld [vmem:[#allocation6 + $0xd8] sm:$0xff]
      %v94 = vld [vmem:[#allocation6 + $0xe0] sm:$0xff]
      %v95 = vld [vmem:[#allocation6 + $0xe8] sm:$0xff]
      %v96 = vld [vmem:[#allocation6 + $0xf0] sm:$0xff]
      %v97 = vld [vmem:[#allocation6 + $0xf8] sm:$0xff]
      %v98 = vld [vmem:[#allocation6 + $0x100] sm:$0xff]
      %v99 = vld [vmem:[#allocation6 + $0x108] sm:$0xff]
      %v100 = vld [vmem:[#allocation6 + $0x110] sm:$0xff]
      %v101 = vld [vmem:[#allocation6 + $0x118] sm:$0xff]
      %v102 = vld [vmem:[#allocation6 + $0x120] sm:$0xff]
      %v103 = vld [vmem:[#allocation6 + $0x128] sm:$0xff]
      %v104 = vld [vmem:[#allocation6 + $0x130] sm:$0xff]
      %v105 = vld [vmem:[#allocation6 + $0x138] sm:$0xff]
      %v106 = vld [vmem:[#allocation6 + $0x140] sm:$0xff]
      %v107 = vld [vmem:[#allocation6 + $0x148] sm:$0xff]
      %v108 = vld [vmem:[#allocation6 + $0x150] sm:$0xff]
      %v109 = vld [vmem:[#allocation6 + $0x158] sm:$0xff]
      %v110 = vld [vmem:[#allocation6 + $0x160] sm:$0xff]
      %v111 = vld [vmem:[#allocation6 + $0x168] sm:$0xff]
      %v112 = vld [vmem:[#allocation6 + $0x170] sm:$0xff]
      %v113 = vld [vmem:[#allocation6 + $0x178] sm:$0xff]
      %v114 = vld [vmem:[#allocation6 + $0x180] sm:$0xff]
      %v115 = vld [vmem:[#allocation6 + $0x188] sm:$0xff]
      %v116 = vld [vmem:[#allocation6 + $0x190] sm:$0xff]
      %v117 = vld [vmem:[#allocation6 + $0x198] sm:$0xff]
      %v118 = vld [vmem:[#allocation6 + $0x1a0] sm:$0xff]
      %v119 = vld [vmem:[#allocation6 + $0x1a8] sm:$0xff]
      %v120 = vld [vmem:[#allocation6 + $0x1b0] sm:$0xff]
      %v121 = vld [vmem:[#allocation6 + $0x1b8] sm:$0xff]
      %v122 = vld [vmem:[#allocation6 + $0x1c0] sm:$0xff]
      %v123 = vld [vmem:[#allocation6 + $0x1c8] sm:$0xff]
      %v124 = vld [vmem:[#allocation6 + $0x1d0] sm:$0xff]
      %v125 = vld [vmem:[#allocation6 + $0x1d8] sm:$0xff]
      %v126 = vld [vmem:[#allocation6 + $0x1e0] sm:$0xff]
      %v127 = vld [vmem:[#allocation6 + $0x1e8] sm:$0xff]
      %v128 = vld [vmem:[#allocation6 + $0x1f0] sm:$0xff]
      %v129 = vld [vmem:[#allocation6 + $0x1f8] sm:$0xff]
      %v130 = vld [vmem:[%s2] sm:$0x3]
      %v132 = vlaneseq
      %v133 = vshrl.u32 %v132, 7
      %v134 = vsub.s32 0, %v133
      %v135 = vrot.slane %v130, %v134
      %v136 = vlaneseq
      %v137 = vshrl.u32 %v136, 7
      %v138 = vsub.s32 1, %v137
      %v139 = vrot.slane %v130, %v138
      %142 = vmatprep.subr.mxu0 %v67
      %143 = vmatpush1.msra.mxu0 %v66
      %144 = vmatprep.subr.mxu0 %v69
      %145 = vmatpush1.msra.mxu0 %v68
      %146 = vmatprep.subr.mxu0 %v71
      %147 = vmatpush1.msra.mxu0 %v70
      %148 = vmatprep.subr.mxu0 %v73
      %149 = vmatpush1.msra.mxu0 %v72
      %150 = vmatprep.subr.mxu0 %v75
      %151 = vmatpush1.msra.mxu0 %v74
      %152 = vmatprep.subr.mxu0 %v77
      %153 = vmatpush1.msra.mxu0 %v76
      %154 = vmatprep.subr.mxu0 %v79
      %155 = vmatpush1.msra.mxu0 %v78
      %156 = vmatprep.subr.mxu0 %v81
      %157 = vmatpush1.msra.mxu0 %v80
      %158 = vmatprep.subr.mxu0 %v83
      %159 = vmatpush1.msra.mxu0 %v82
      %160 = vmatprep.subr.mxu0 %v85
      %161 = vmatpush1.msra.mxu0 %v84
      %162 = vmatprep.subr.mxu0 %v87
      %163 = vmatpush1.msra.mxu0 %v86
      %164 = vmatprep.subr.mxu0 %v89
      %165 = vmatpush1.msra.mxu0 %v88
      %166 = vmatprep.subr.mxu0 %v91
      %167 = vmatpush1.msra.mxu0 %v90
      %168 = vmatprep.subr.mxu0 %v93
      %169 = vmatpush1.msra.mxu0 %v92
      %170 = vmatprep.subr.mxu0 %v95
      %171 = vmatpush1.msra.mxu0 %v94
      %172 = vmatprep.subr.mxu0 %v97
      %173 = vmatpush1.msra.mxu0 %v96
      %174 = vmatprep.subr.mxu0 %v99
      %175 = vmatpush1.msra.mxu0 %v98
      %176 = vmatprep.subr.mxu0 %v101
      %177 = vmatpush1.msra.mxu0 %v100
      %178 = vmatprep.subr.mxu0 %v103
      %179 = vmatpush1.msra.mxu0 %v102
      %180 = vmatprep.subr.mxu0 %v105
      %181 = vmatpush1.msra.mxu0 %v104
      %182 = vmatprep.subr.mxu0 %v107
      %183 = vmatpush1.msra.mxu0 %v106
      %184 = vmatprep.subr.mxu0 %v109
      %185 = vmatpush1.msra.mxu0 %v108
      %186 = vmatprep.subr.mxu0 %v111
      %187 = vmatpush1.msra.mxu0 %v110
      %188 = vmatprep.subr.mxu0 %v113
      %189 = vmatpush1.msra.mxu0 %v112
      %190 = vmatprep.subr.mxu0 %v115
      %191 = vmatpush1.msra.mxu0 %v114
      %192 = vmatprep.subr.mxu0 %v117
      %193 = vmatpush1.msra.mxu0 %v116
      %194 = vmatprep.subr.mxu0 %v119
      %195 = vmatpush1.msra.mxu0 %v118
      %196 = vmatprep.subr.mxu0 %v121
      %197 = vmatpush1.msra.mxu0 %v120
      %198 = vmatprep.subr.mxu0 %v123
      %199 = vmatpush1.msra.mxu0 %v122
      %200 = vmatprep.subr.mxu0 %v125
      %201 = vmatpush1.msra.mxu0 %v124
      %202 = vmatprep.subr.mxu0 %v127
      %203 = vmatpush1.msra.mxu0 %v126
      %204 = vmatprep.subr.mxu0 %v129
      %205 = vmatpush1.msra.mxu0 %v128
      %206 = vmatprep.mubr.f32.mxu0 %v65
      %207 = vmatmul.mubr.f32.gmra.mrb[0].mxu0 %v64
      %v208 = vpop.f32.mrb[0].mxu0
      %v209 = vadd.f32 %v135, %v208
      %v210 = vpop.f32.mrb[0].mxu0
      %v211 = vadd.f32 %v139, %v210
      %212 = vdwg.mxu0
      %v213 = vxor.u32 %v209, 2147483648
      %v214 = vmul.f32 %v213, 1.442695
      %v215 = vpow.pop %v214
      %v216 = vadd.f32 %v215, 1.0
      %v217 = vrcp.pop %v216
      %v218 = vmul.f32 1.0, %v217
      %v219 = vsub.f32 %v209, %v211
      %v220 = vmul.f32 %v219, 0.5
      %v221 = vmul.f32 %v218, %v211
      %v222 = vadd.f32 %v220, %v221
      %223 = vst [vmem:[#allocation2] sm:$0xff] %v222
    $region37: #{tpu_custom_call.1} parent=1 // pred_fallthru
      _
    %v224 = vld [vmem:[#allocation2] sm:$0xff]
    %v225 = vld [vmem:[#allocation8] sm:$0xff]
    %v226 = vld [vmem:[#allocation8 + $0x8] sm:$0xff]
    %v227 = vld [vmem:[#allocation8 + $0x10] sm:$0xff]
    %v228 = vld [vmem:[#allocation8 + $0x18] sm:$0xff]
    %v229 = vld [vmem:[#allocation8 + $0x20] sm:$0xff]
    %v230 = vld [vmem:[#allocation8 + $0x28] sm:$0xff]
    %v231 = vld [vmem:[#allocation8 + $0x30] sm:$0xff]
    %v232 = vld [vmem:[#allocation8 + $0x38] sm:$0xff]
    %v233 = vld [vmem:[#allocation8 + $0x40] sm:$0xff]
    %v234 = vld [vmem:[#allocation8 + $0x48] sm:$0xff]
    %v235 = vld [vmem:[#allocation8 + $0x50] sm:$0xff]
    %v236 = vld [vmem:[#allocation8 + $0x58] sm:$0xff]
    %v237 = vld [vmem:[#allocation8 + $0x60] sm:$0xff]
    %v238 = vld [vmem:[#allocation8 + $0x68] sm:$0xff]
    %v239 = vld [vmem:[#allocation8 + $0x70] sm:$0xff]
    %v240 = vld [vmem:[#allocation8 + $0x78] sm:$0xff]
    %v241 = vld [vmem:[%s4] sm:$0x1]
    %v243 = vlaneseq
    %v244 = vshrl.u32 %v243, 7
    %v245 = vsub.s32 0, %v244
    %v246 = vrot.slane %v241, %v245
    %248 = vmatprep.subr.mxu0 0.0
    %249 = vmatpush1.msra.mxu0 %v225
    %250 = vmatprep.subr.mxu0 0.0
    %251 = vmatpush1.msra.mxu0 %v226
    %252 = vmatprep.subr.mxu0 0.0
    %253 = vmatpush1.msra.mxu0 %v227
    %254 = vmatprep.subr.mxu0 0.0
    %255 = vmatpush1.msra.mxu0 %v228
    %256 = vmatprep.subr.mxu0 0.0
    %257 = vmatpush1.msra.mxu0 %v229
    %258 = vmatprep.subr.mxu0 0.0
    %259 = vmatpush1.msra.mxu0 %v230
    %260 = vmatprep.subr.mxu0 0.0
    %261 = vmatpush1.msra.mxu0 %v231
    %262 = vmatprep.subr.mxu0 0.0
    %263 = vmatpush1.msra.mxu0 %v232
    %264 = vmatprep.subr.mxu0 0.0
    %265 = vmatpush1.msra.mxu0 %v233
    %266 = vmatprep.subr.mxu0 0.0
    %267 = vmatpush1.msra.mxu0 %v234
    %268 = vmatprep.subr.mxu0 0.0
    %269 = vmatpush1.msra.mxu0 %v235
    %270 = vmatprep.subr.mxu0 0.0
    %271 = vmatpush1.msra.mxu0 %v236
    %272 = vmatprep.subr.mxu0 0.0
    %273 = vmatpush1.msra.mxu0 %v237
    %274 = vmatprep.subr.mxu0 0.0
    %275 = vmatpush1.msra.mxu0 %v238
    %276 = vmatprep.subr.mxu0 0.0
    %277 = vmatpush1.msra.mxu0 %v239
    %278 = vmatprep.subr.mxu0 0.0
    %279 = vmatpush1.msra.mxu0 %v240
    %280 = vmatprep.subr.mxu0 0.0
    %281 = vmatpush1.msra.mxu0 0.0
    %282 = vmatprep.subr.mxu0 0.0
    %283 = vmatpush1.msra.mxu0 0.0
    %284 = vmatprep.subr.mxu0 0.0
    %285 = vmatpush1.msra.mxu0 0.0
    %286 = vmatprep.subr.mxu0 0.0
    %287 = vmatpush1.msra.mxu0 0.0
    %288 = vmatprep.subr.mxu0 0.0
    %289 = vmatpush1.msra.mxu0 0.0
    %290 = vmatprep.subr.mxu0 0.0
    %291 = vmatpush1.msra.mxu0 0.0
    %292 = vmatprep.subr.mxu0 0.0
    %293 = vmatpush1.msra.mxu0 0.0
    %294 = vmatprep.subr.mxu0 0.0
    %295 = vmatpush1.msra.mxu0 0.0
    %296 = vmatprep.subr.mxu0 0.0
    %297 = vmatpush1.msra.mxu0 0.0
    %298 = vmatprep.subr.mxu0 0.0
    %299 = vmatpush1.msra.mxu0 0.0
    %300 = vmatprep.subr.mxu0 0.0
    %301 = vmatpush1.msra.mxu0 0.0
    %302 = vmatprep.subr.mxu0 0.0
    %303 = vmatpush1.msra.mxu0 0.0
    %304 = vmatprep.subr.mxu0 0.0
    %305 = vmatpush1.msra.mxu0 0.0
    %306 = vmatprep.subr.mxu0 0.0
    %307 = vmatpush1.msra.mxu0 0.0
    %308 = vmatprep.subr.mxu0 0.0
    %309 = vmatpush1.msra.mxu0 0.0
    %310 = vmatprep.subr.mxu0 0.0
    %311 = vmatpush1.msra.mxu0 0.0
    %312 = vmatprep.mubr.f32.mxu0 0.0
    %313 = vmatmul.mubr.f32.gmra.mrb[0].mxu0 %v224
    %v314 = vpop.f32.mrb[0].mxu0
    %v315 = vadd.f32 %v246, %v314
    %v316 = vpop.f32.mrb[0].mxu0
    %317 = vdwg.mxu0
    %318 = vst [vmem:[#allocation9] sm:$0xff] %v315
    // Predicated region
    $region38: #{tpu_custom_call.1} parent=1 // pred_check
      _
    $region39: #{tpu_custom_call.1} parent=1 // pred_check_branch
      %320 = sbr.rel (0) target = $region41
    $region40: #{tpu_custom_call.1} parent=1 // pred_region
      %s322 = ssub.s32 128, 128
      %323 = vsyncadd [#allocation5], %s322
      %s325 = sshll.u32 [#allocation9], 4
      %s326 = int_to_ptr.vmem [resolvable:$true] %s325
      %328 = dma.vmem_to_hbm [thread:$0]  %s326, 128, %s5, [#allocation5]
    $region41: #{tpu_custom_call.1} parent=1 // pred_fallthru
      _
    // Predicated region
    $region42: #{tpu_custom_call.1} parent=1 // pred_check
      _
    $region43: #{tpu_custom_call.1} parent=1 // pred_check_branch
      %330 = sbr.rel (0) target = $region45
    $region44: #{tpu_custom_call.1} parent=1 // pred_region
      %331 = dma.done [#allocation5], 128
    $region45: #{tpu_custom_call.1} parent=1 // pred_fallthru
      _
    %332 = vsyncpa [#allocation4], 1
    %333 = vsyncpa [#allocation7], 1
    %334 = vsyncpa [#allocation5], 1

</llo_original>
